<compile_context>
chip_gen: v7x
topology: tpu7x:2x2x1
jax: 0.10.0
libtpu: 0.0.40
codegen_flags: <defaults>
</compile_context>

<pallas_src>
import jax
import jax.numpy as jnp
from jax.experimental import pallas as pl
from jax.experimental.pallas import tpu as pltpu

LN_EPS = 1e-5  # torch.nn.LayerNorm default


def _patch_merging_kernel(x_ref, g_ref, b_ref, w_ref, o_ref):
    """x_ref: (TM, 6C) merged rows; g/b: (1, 6C); w: (6C, C); o: (TM, C)."""
    x = x_ref[...].astype(jnp.float32)
    mu = jnp.mean(x, axis=-1, keepdims=True)
    xc = x - mu
    var = jnp.mean(xc * xc, axis=-1, keepdims=True)
    xn = xc * jax.lax.rsqrt(var + LN_EPS)
    xn = xn * g_ref[...].astype(jnp.float32) + b_ref[...].astype(jnp.float32)
    o_ref[...] = jnp.dot(
        xn, w_ref[...], preferred_element_type=jnp.float32
    ).astype(o_ref.dtype)


def patch_merging_6x1(x, gamma, beta, w_reduction, *, tile_m=512):
    """Forward of PatchMerging_6x1.

    x:           (B, L, C),  L % 6 == 0
    gamma, beta: (6C,)        LayerNorm affine params
    w_reduction: (C, 6C)      nn.Linear(6C -> C, bias=False) weight (PyTorch layout)
    returns:     (B, L//6, C)
    """
    B, L, C = x.shape
    assert L % 6 == 0, f"x size ({L}) is not a multiple of 6."
    M = B * (L // 6)
    C6 = 6 * C
    assert gamma.shape == (C6,) and beta.shape == (C6,)
    assert w_reduction.shape == (C, C6)

    # The 6-way strided slice + concat of the reference is a contiguous
    # reshape; flattening (B, L//6) -> M is also free (HLO bitcasts).
    x2 = x.reshape(M, C6)
    g2 = gamma.reshape(1, C6)
    b2 = beta.reshape(1, C6)
    wt = w_reduction.T  # one-time (C,6C) -> (6C,C) relayout for the MXU

    tm = min(tile_m, M)
    grid = (pl.cdiv(M, tm),)

    out = pl.pallas_call(
        _patch_merging_kernel,
        out_shape=jax.ShapeDtypeStruct((M, C), x.dtype),
        grid=grid,
        in_specs=[
            pl.BlockSpec((tm, C6), lambda i: (i, 0)),   # row tile of merged tokens
            pl.BlockSpec((1, C6), lambda i: (0, 0)),    # gamma (resident)
            pl.BlockSpec((1, C6), lambda i: (0, 0)),    # beta  (resident)
            pl.BlockSpec((C6, C), lambda i: (0, 0)),    # reduction weight (resident)
        ],
        out_specs=pl.BlockSpec((tm, C), lambda i: (i, 0)),
        compiler_params=pltpu.CompilerParams(
            dimension_semantics=("parallel",)),
    )(x2, g2, b2, wt)
    return out.reshape(B, L // 6, C)


def _reference(x, gamma, beta, w_reduction):
    """Pure-JAX mirror of the PyTorch module (explicit strided slices + concat)."""
    B, L, C = x.shape
    xs = [x[:, i::6, :] for i in range(6)]
    xm = jnp.concatenate(xs, axis=-1).reshape(B, L // 6, 6 * C)
    mu = jnp.mean(xm, axis=-1, keepdims=True)
    var = jnp.mean((xm - mu) ** 2, axis=-1, keepdims=True)
    xn = (xm - mu) / jnp.sqrt(var + LN_EPS) * gamma + beta
    return jnp.einsum("blk,ck->blc", xn, w_reduction)  # x @ W.T (bias=False)


if __name__ == "__main__":
    # Small shapes consistent with the module: L multiple of 6; dim chosen so
    # 6*dim (=768) and dim (=128) are lane-dense multiples of 128.
    B, L, DIM = 2, 48, 128
    key = jax.random.PRNGKey(0)
    kx, kg, kb, kw = jax.random.split(key, 4)

    x = jax.random.normal(kx, (B, L, DIM), dtype=jnp.float32)
    gamma = 1.0 + 0.1 * jax.random.normal(kg, (6 * DIM,), dtype=jnp.float32)
    beta = 0.1 * jax.random.normal(kb, (6 * DIM,), dtype=jnp.float32)
    # nn.Linear(6*dim, dim, bias=False) weight in native PyTorch (out, in) layout.
    w_red = 0.02 * jax.random.normal(kw, (DIM, 6 * DIM), dtype=jnp.float32)

    out = jax.block_until_ready(patch_merging_6x1(x, gamma, beta, w_red))
    assert out.shape == (B, L // 6, DIM), out.shape
    assert bool(jnp.all(jnp.isfinite(out)))

    ref = jax.block_until_ready(_reference(x, gamma, beta, w_red))
    assert jnp.allclose(out, ref, atol=1e-2, rtol=1e-2), float(
        jnp.max(jnp.abs(out - ref)))

    print("KERNEL_OK")
</pallas_src>

<mosaic_0001>
module attributes {stable_mosaic.version = 11 : i64} {
  func.func @_patch_merging_kernel(%arg0: i32, %arg1: memref<16x768xf32, #tpu.memory_space<vmem>>, %arg2: memref<1x768xf32, #tpu.memory_space<vmem>>, %arg3: memref<1x768xf32, #tpu.memory_space<vmem>>, %arg4: memref<768x128xf32, #tpu.memory_space<vmem>>, %arg5: memref<16x128xf32, #tpu.memory_space<vmem>>) attributes {dimension_semantics = [#tpu.dimension_semantics<parallel>], iteration_bounds = array<i64: 1>, scalar_prefetch = 0 : i64, scratch_operands = 0 : i64, tpu.core_type = #tpu.core_type<tc>, window_params = [{transform_indices = @transform_0, window_bounds = array<i64: 16, 768>}, {pipeline_mode = #tpu.pipeline_mode<synchronous>, transform_indices = @transform_1, window_bounds = array<i64: 1, 768>}, {pipeline_mode = #tpu.pipeline_mode<synchronous>, transform_indices = @transform_2, window_bounds = array<i64: 1, 768>}, {pipeline_mode = #tpu.pipeline_mode<synchronous>, transform_indices = @transform_3, window_bounds = array<i64: 768, 128>}, {transform_indices = @transform_4, window_bounds = array<i64: 16, 128>}]} {
    %c0 = arith.constant 0 : index
    %c0_0 = arith.constant 0 : index
    %0 = vector.load %arg1[%c0, %c0_0] : memref<16x768xf32, #tpu.memory_space<vmem>>, vector<16x768xf32>
    %cst = arith.constant dense<0.000000e+00> : vector<16xf32>
    %1 = vector.multi_reduction <add>, %0, %cst [1] : vector<16x768xf32> to vector<16xf32>
    %2 = vector.shape_cast %1 : vector<16xf32> to vector<16x1xf32>
    %cst_1 = arith.constant 7.680000e+02 : f32
    %3 = vector.broadcast %cst_1 : f32 to vector<16x1xf32>
    %4 = arith.divf %2, %3 : vector<16x1xf32>
    %5 = vector.broadcast %4 : vector<16x1xf32> to vector<16x768xf32>
    %6 = arith.subf %0, %5 : vector<16x768xf32>
    %7 = arith.mulf %6, %6 : vector<16x768xf32>
    %cst_2 = arith.constant dense<0.000000e+00> : vector<16xf32>
    %8 = vector.multi_reduction <add>, %7, %cst_2 [1] : vector<16x768xf32> to vector<16xf32>
    %9 = vector.shape_cast %8 : vector<16xf32> to vector<16x1xf32>
    %cst_3 = arith.constant 7.680000e+02 : f32
    %10 = vector.broadcast %cst_3 : f32 to vector<16x1xf32>
    %11 = arith.divf %9, %10 : vector<16x1xf32>
    %cst_4 = arith.constant 9.99999974E-6 : f32
    %12 = vector.broadcast %cst_4 : f32 to vector<16x1xf32>
    %13 = arith.addf %11, %12 : vector<16x1xf32>
    %14 = math.rsqrt %13 : vector<16x1xf32>
    %15 = vector.broadcast %14 : vector<16x1xf32> to vector<16x768xf32>
    %16 = arith.mulf %6, %15 : vector<16x768xf32>
    %c0_5 = arith.constant 0 : index
    %c0_6 = arith.constant 0 : index
    %17 = vector.load %arg2[%c0_5, %c0_6] : memref<1x768xf32, #tpu.memory_space<vmem>>, vector<1x768xf32>
    %18 = vector.broadcast %17 : vector<1x768xf32> to vector<16x768xf32>
    %19 = arith.mulf %16, %18 : vector<16x768xf32>
    %c0_7 = arith.constant 0 : index
    %c0_8 = arith.constant 0 : index
    %20 = vector.load %arg3[%c0_7, %c0_8] : memref<1x768xf32, #tpu.memory_space<vmem>>, vector<1x768xf32>
    %21 = vector.broadcast %20 : vector<1x768xf32> to vector<16x768xf32>
    %22 = arith.addf %19, %21 : vector<16x768xf32>
    %c0_9 = arith.constant 0 : index
    %c0_10 = arith.constant 0 : index
    %23 = vector.load %arg4[%c0_9, %c0_10] : memref<768x128xf32, #tpu.memory_space<vmem>>, vector<768x128xf32>
    %cst_11 = arith.constant dense<0.000000e+00> : vector<16x128xf32>
    %24 = tpu.matmul %22, %23, %cst_11 {dimension_numbers = #tpu.dot_dimension_numbers<[1], [0], [0], [1], [0, 0, 1, 1], [], []>} : vector<16x768xf32>, vector<768x128xf32>, vector<16x128xf32> -> vector<16x128xf32>
    %c0_12 = arith.constant 0 : index
    %c0_13 = arith.constant 0 : index
    %25 = vector.load %arg5[%c0_12, %c0_13] : memref<16x128xf32, #tpu.memory_space<vmem>>, vector<16x128xf32>
    tpu.vector_store %arg5[%c0_12, %c0_13], %24 {strides = array<i32>} : memref<16x128xf32, #tpu.memory_space<vmem>>, vector<16x128xf32>,
    return
  }
  func.func @transform_0(%arg0: i32) -> (i32, i32) {
    %c0_i32 = arith.constant 0 : i32
    %c0_i32_0 = arith.constant 0 : i32
    return %arg0, %c0_i32 : i32, i32
  }
  func.func @transform_1(%arg0: i32) -> (i32, i32) {
    %c0_i32 = arith.constant 0 : i32
    %c0_i32_0 = arith.constant 0 : i32
    %c0_i32_1 = arith.constant 0 : i32
    return %c0_i32, %c0_i32_0 : i32, i32
  }
  func.func @transform_2(%arg0: i32) -> (i32, i32) {
    %c0_i32 = arith.constant 0 : i32
    %c0_i32_0 = arith.constant 0 : i32
    %c0_i32_1 = arith.constant 0 : i32
    return %c0_i32, %c0_i32_0 : i32, i32
  }
  func.func @transform_3(%arg0: i32) -> (i32, i32) {
    %c0_i32 = arith.constant 0 : i32
    %c0_i32_0 = arith.constant 0 : i32
    %c0_i32_1 = arith.constant 0 : i32
    return %c0_i32, %c0_i32_0 : i32, i32
  }
  func.func @transform_4(%arg0: i32) -> (i32, i32) {
    %c0_i32 = arith.constant 0 : i32
    %c0_i32_0 = arith.constant 0 : i32
    return %arg0, %c0_i32 : i32, i32
  }
}

</mosaic_0001>

<llo_original>
// kernel: tpu_custom_call.1
$region0: #{tpu_custom_call.1}
  #allocation0 [shape = 'u32[]', space=smem, size = 0x4, offset = 0x4, fixed_abs, tag = 'smem constant byte address 0x4 - core index']
  #allocation1 [shape = 'u32[144,128]{1,0:T(1,128)}', space=vmem, size = 0x12000, scoped, tag = 'internal scratch']
  %s0 = inlined_call_operand.hbm [shape: f32[16,768], index: 0, kind: input, shape index: {}]
  %s1 = inlined_call_operand.hbm [shape: f32[1,768], index: 1, kind: input, shape index: {}]
  %s2 = inlined_call_operand.vmem [shape: f32[1,768], index: 2, kind: input, shape index: {}]
  %s3 = inlined_call_operand.hbm [shape: f32[768,128], index: 3, kind: input, shape index: {}]
  %s4 = inlined_call_operand.hbm [shape: f32[16,128], index: 4, kind: output, shape index: {}]
  %s5 = sld [smem:[#allocation0]]
  $region38: #{tpu_custom_call.1} parent=0
    _
  %s7 = ssub.s32 1, %s5
  %s8 = scalar_select 0, %s7, %s5
  $region1: #{tpu_custom_call.1} parent=0
    #allocation2 [shape = 'u8[49152]{0}', space=vmem, size = 0xc000, scoped, tag = 'input window, operand 0, single buffered']
    #allocation3 [shape = 's32[1]{0}', space=sflag, size = 0x4, scoped, tag = 'scoped memory for tpu_custom_call.1']
    #allocation4 [shape = 's32[1]{0}', space=sflag, size = 0x4, scoped, tag = 'scoped memory for tpu_custom_call.1']
    #allocation5 [shape = 'u8[3072]{0}', space=vmem, size = 0xc00, scoped, tag = 'input window, operand 1, single buffered']
    #allocation6 [shape = 's32[1]{0}', space=sflag, size = 0x4, scoped, tag = 'scoped memory for tpu_custom_call.1']
    #allocation7 [shape = 'u8[393216]{0}', space=vmem, size = 0x60000, scoped, tag = 'input window, operand 3, single buffered']
    #allocation8 [shape = 'u8[8192]{0}', space=vmem, size = 0x2000, scoped, tag = 'output window, operand 0, single buffered']
    %9 = vsyncpa [#allocation3], 0
    %10 = vsyncpa [#allocation6], 0
    %11 = vsyncpa [#allocation4], 0
    // Predicated region
    $region2: #{tpu_custom_call.1} parent=1 // pred_check
      _
    $region3: #{tpu_custom_call.1} parent=1 // pred_check_branch
      %13 = sbr.rel (0) target = $region5
    $region4: #{tpu_custom_call.1} parent=1 // pred_region
      %s15 = ssub.s32 1536, 1536
      %16 = vsyncadd [#allocation3], %s15
      %s17 = sshll.u32 [#allocation2], 4
      %s18 = int_to_ptr.vmem [resolvable:$true] %s17
      %23 = dma.hbm_to_vmem [thread:$0]  %s0, 1536, %s18, [#allocation3], 768, 768, 48
    $region5: #{tpu_custom_call.1} parent=1 // pred_fallthru
      _
    // Predicated region
    $region6: #{tpu_custom_call.1} parent=1 // pred_check
      _
    $region7: #{tpu_custom_call.1} parent=1 // pred_check_branch
      %25 = sbr.rel (0) target = $region9
    $region8: #{tpu_custom_call.1} parent=1 // pred_region
      %s27 = ssub.s32 96, 96
      %28 = vsyncadd [#allocation6], %s27
      %s30 = sshll.u32 [#allocation5], 4
      %s31 = int_to_ptr.vmem [resolvable:$true] %s30
      %33 = dma.hbm_to_vmem [thread:$0]  %s1, 96, %s31, [#allocation6]
    $region9: #{tpu_custom_call.1} parent=1 // pred_fallthru
      _
    // Predicated region
    $region10: #{tpu_custom_call.1} parent=1 // pred_check
      _
    $region11: #{tpu_custom_call.1} parent=1 // pred_check_branch
      %35 = sbr.rel (0) target = $region13
    $region12: #{tpu_custom_call.1} parent=1 // pred_region
      _
    $region13: #{tpu_custom_call.1} parent=1 // pred_fallthru
      _
    // Predicated region
    $region14: #{tpu_custom_call.1} parent=1 // pred_check
      _
    $region15: #{tpu_custom_call.1} parent=1 // pred_check_branch
      %37 = sbr.rel (0) target = $region17
    $region16: #{tpu_custom_call.1} parent=1 // pred_region
      %s39 = ssub.s32 12288, 12288
      %40 = vsyncadd [#allocation6], %s39
      %s41 = sshll.u32 [#allocation7], 4
      %s42 = int_to_ptr.vmem [resolvable:$true] %s41
      %47 = dma.hbm_to_vmem [thread:$0]  %s3, 12288, %s42, [#allocation6], 128, 128, 8
    $region17: #{tpu_custom_call.1} parent=1 // pred_fallthru
      _
    // Predicated region
    $region18: #{tpu_custom_call.1} parent=1 // pred_check
      _
    $region19: #{tpu_custom_call.1} parent=1 // pred_check_branch
      %49 = sbr.rel (0) target = $region21
    $region20: #{tpu_custom_call.1} parent=1 // pred_region
      %50 = dma.done [#allocation3], 1536
    $region21: #{tpu_custom_call.1} parent=1 // pred_fallthru
      _
    // Predicated region
    $region22: #{tpu_custom_call.1} parent=1 // pred_check
      _
    $region23: #{tpu_custom_call.1} parent=1 // pred_check_branch
      %52 = sbr.rel (0) target = $region25
    $region24: #{tpu_custom_call.1} parent=1 // pred_region
      %53 = dma.done [#allocation6], 96
    $region25: #{tpu_custom_call.1} parent=1 // pred_fallthru
      _
    // Predicated region
    $region26: #{tpu_custom_call.1} parent=1 // pred_check
      _
    $region27: #{tpu_custom_call.1} parent=1 // pred_check_branch
      %55 = sbr.rel (0) target = $region29
    $region28: #{tpu_custom_call.1} parent=1 // pred_region
      %56 = dma.done [#allocation6], 12288
    $region29: #{tpu_custom_call.1} parent=1 // pred_fallthru
      _
    %v57 = vld [vmem:[#allocation2] sm:$0xff]
    %v58 = vld [vmem:[#allocation2 + $0x8] sm:$0xff]
    %v59 = vld [vmem:[#allocation2 + $0x10] sm:$0xff]
    %v60 = vld [vmem:[#allocation2 + $0x18] sm:$0xff]
    %v61 = vld [vmem:[#allocation2 + $0x20] sm:$0xff]
    %v62 = vld [vmem:[#allocation2 + $0x28] sm:$0xff]
    %v63 = vld [vmem:[#allocation2 + $0x30] sm:$0xff]
    %v64 = vld [vmem:[#allocation2 + $0x38] sm:$0xff]
    %v65 = vld [vmem:[#allocation2 + $0x40] sm:$0xff]
    %v66 = vld [vmem:[#allocation2 + $0x48] sm:$0xff]
    %v67 = vld [vmem:[#allocation2 + $0x50] sm:$0xff]
    %v68 = vld [vmem:[#allocation2 + $0x58] sm:$0xff]
    %v69 = vadd.f32 %v57, %v58
    %v70 = vadd.f32 %v69, %v59
    %v71 = vadd.f32 %v70, %v60
    %v72 = vadd.f32 %v71, %v61
    %v73 = vadd.f32 %v72, %v62
    %74 = vadd.xlane.f32.xlu0 %v73
    %v75 = vpop.xlane.xlu0 %74
    %v76 = vadd.f32 %v63, %v64
    %v77 = vadd.f32 %v76, %v65
    %v78 = vadd.f32 %v77, %v66
    %v79 = vadd.f32 %v78, %v67
    %v80 = vadd.f32 %v79, %v68
    %81 = vadd.xlane.f32.xlu0 %v80
    %v82 = vpop.xlane.xlu0 %81
    %v83 = vrcp.pop 768.0
    %v84 = vmul.f32 %v75, %v83
    %v85 = vmul.f32 %v82, %v83
    %v86 = vsub.f32 %v57, %v84
    %v87 = vsub.f32 %v58, %v84
    %v88 = vsub.f32 %v59, %v84
    %v89 = vsub.f32 %v60, %v84
    %v90 = vsub.f32 %v61, %v84
    %v91 = vsub.f32 %v62, %v84
    %v92 = vsub.f32 %v63, %v85
    %v93 = vsub.f32 %v64, %v85
    %v94 = vsub.f32 %v65, %v85
    %v95 = vsub.f32 %v66, %v85
    %v96 = vsub.f32 %v67, %v85
    %v97 = vsub.f32 %v68, %v85
    %v98 = vmul.f32 %v86, %v86
    %v99 = vmul.f32 %v87, %v87
    %v100 = vmul.f32 %v88, %v88
    %v101 = vmul.f32 %v89, %v89
    %v102 = vmul.f32 %v90, %v90
    %v103 = vmul.f32 %v91, %v91
    %v104 = vmul.f32 %v92, %v92
    %v105 = vmul.f32 %v93, %v93
    %v106 = vmul.f32 %v94, %v94
    %v107 = vmul.f32 %v95, %v95
    %v108 = vmul.f32 %v96, %v96
    %v109 = vmul.f32 %v97, %v97
    %v110 = vadd.f32 %v98, %v99
    %v111 = vadd.f32 %v110, %v100
    %v112 = vadd.f32 %v111, %v101
    %v113 = vadd.f32 %v112, %v102
    %v114 = vadd.f32 %v113, %v103
    %115 = vadd.xlane.f32.xlu0 %v114
    %v116 = vpop.xlane.xlu0 %115
    %v117 = vadd.f32 %v104, %v105
    %v118 = vadd.f32 %v117, %v106
    %v119 = vadd.f32 %v118, %v107
    %v120 = vadd.f32 %v119, %v108
    %v121 = vadd.f32 %v120, %v109
    %122 = vadd.xlane.f32.xlu0 %v121
    %v123 = vpop.xlane.xlu0 %122
    %v124 = vmul.f32 %v116, %v83
    %v125 = vmul.f32 %v123, %v83
    %v126 = vadd.f32 %v124, 1e-05
    %v127 = vadd.f32 %v125, 1e-05
    %v128 = vrsqrt.pop %v126
    %v129 = vrsqrt.pop %v127
    %v130 = vmul.f32 %v86, %v128
    %v131 = vmul.f32 %v87, %v128
    %v132 = vmul.f32 %v88, %v128
    %v133 = vmul.f32 %v89, %v128
    %v134 = vmul.f32 %v90, %v128
    %v135 = vmul.f32 %v91, %v128
    %v136 = vmul.f32 %v92, %v129
    %v137 = vmul.f32 %v93, %v129
    %v138 = vmul.f32 %v94, %v129
    %v139 = vmul.f32 %v95, %v129
    %v140 = vmul.f32 %v96, %v129
    %v141 = vmul.f32 %v97, %v129
    %v142 = vld [vmem:[#allocation5] sm:$0x3f]
    %v144 = vlaneseq
    %v145 = vshrl.u32 %v144, 7
    %v146 = vsub.s32 0, %v145
    %v147 = vrot.slane %v142, %v146
    %v148 = vlaneseq
    %v149 = vshrl.u32 %v148, 7
    %v150 = vsub.s32 1, %v149
    %v151 = vrot.slane %v142, %v150
    %v152 = vlaneseq
    %v153 = vshrl.u32 %v152, 7
    %v154 = vsub.s32 2, %v153
    %v155 = vrot.slane %v142, %v154
    %v156 = vlaneseq
    %v157 = vshrl.u32 %v156, 7
    %v158 = vsub.s32 3, %v157
    %v159 = vrot.slane %v142, %v158
    %v160 = vlaneseq
    %v161 = vshrl.u32 %v160, 7
    %v162 = vsub.s32 4, %v161
    %v163 = vrot.slane %v142, %v162
    %v164 = vlaneseq
    %v165 = vshrl.u32 %v164, 7
    %v166 = vsub.s32 5, %v165
    %v167 = vrot.slane %v142, %v166
    %v174 = vmul.f32 %v130, %v147
    %v175 = vmul.f32 %v131, %v151
    %v176 = vmul.f32 %v132, %v155
    %v177 = vmul.f32 %v133, %v159
    %v178 = vmul.f32 %v134, %v163
    %v179 = vmul.f32 %v135, %v167
    %v180 = vmul.f32 %v136, %v147
    %v181 = vmul.f32 %v137, %v151
    %v182 = vmul.f32 %v138, %v155
    %v183 = vmul.f32 %v139, %v159
    %v184 = vmul.f32 %v140, %v163
    %v185 = vmul.f32 %v141, %v167
    %v186 = vld [vmem:[%s2] sm:$0x3f]
    %v188 = vlaneseq
    %v189 = vshrl.u32 %v188, 7
    %v190 = vsub.s32 0, %v189
    %v191 = vrot.slane %v186, %v190
    %v192 = vlaneseq
    %v193 = vshrl.u32 %v192, 7
    %v194 = vsub.s32 1, %v193
    %v195 = vrot.slane %v186, %v194
    %v196 = vlaneseq
    %v197 = vshrl.u32 %v196, 7
    %v198 = vsub.s32 2, %v197
    %v199 = vrot.slane %v186, %v198
    %v200 = vlaneseq
    %v201 = vshrl.u32 %v200, 7
    %v202 = vsub.s32 3, %v201
    %v203 = vrot.slane %v186, %v202
    %v204 = vlaneseq
    %v205 = vshrl.u32 %v204, 7
    %v206 = vsub.s32 4, %v205
    %v207 = vrot.slane %v186, %v206
    %v208 = vlaneseq
    %v209 = vshrl.u32 %v208, 7
    %v210 = vsub.s32 5, %v209
    %v211 = vrot.slane %v186, %v210
    %v218 = vadd.f32 %v174, %v191
    %v219 = vadd.f32 %v175, %v195
    %v220 = vadd.f32 %v176, %v199
    %v221 = vadd.f32 %v177, %v203
    %v222 = vadd.f32 %v178, %v207
    %v223 = vadd.f32 %v179, %v211
    %v224 = vadd.f32 %v180, %v191
    %v225 = vadd.f32 %v181, %v195
    %v226 = vadd.f32 %v182, %v199
    %v227 = vadd.f32 %v183, %v203
    %v228 = vadd.f32 %v184, %v207
    %v229 = vadd.f32 %v185, %v211
    %v230 = vld [vmem:[#allocation7] sm:$0xff]
    %v231 = vld [vmem:[#allocation7 + $0x8] sm:$0xff]
    %v232 = vld [vmem:[#allocation7 + $0x10] sm:$0xff]
    %v233 = vld [vmem:[#allocation7 + $0x18] sm:$0xff]
    %v234 = vld [vmem:[#allocation7 + $0x20] sm:$0xff]
    %v235 = vld [vmem:[#allocation7 + $0x28] sm:$0xff]
    %v236 = vld [vmem:[#allocation7 + $0x30] sm:$0xff]
    %v237 = vld [vmem:[#allocation7 + $0x38] sm:$0xff]
    %v238 = vld [vmem:[#allocation7 + $0x40] sm:$0xff]
    %v239 = vld [vmem:[#allocation7 + $0x48] sm:$0xff]
    %v240 = vld [vmem:[#allocation7 + $0x50] sm:$0xff]
    %v241 = vld [vmem:[#allocation7 + $0x58] sm:$0xff]
    %v242 = vld [vmem:[#allocation7 + $0x60] sm:$0xff]
    %v243 = vld [vmem:[#allocation7 + $0x68] sm:$0xff]
    %v244 = vld [vmem:[#allocation7 + $0x70] sm:$0xff]
    %v245 = vld [vmem:[#allocation7 + $0x78] sm:$0xff]
    %v246 = vld [vmem:[#allocation7 + $0x80] sm:$0xff]
    %v247 = vld [vmem:[#allocation7 + $0x88] sm:$0xff]
    %v248 = vld [vmem:[#allocation7 + $0x90] sm:$0xff]
    %v249 = vld [vmem:[#allocation7 + $0x98] sm:$0xff]
    %v250 = vld [vmem:[#allocation7 + $0xa0] sm:$0xff]
    %v251 = vld [vmem:[#allocation7 + $0xa8] sm:$0xff]
    %v252 = vld [vmem:[#allocation7 + $0xb0] sm:$0xff]
    %v253 = vld [vmem:[#allocation7 + $0xb8] sm:$0xff]
    %v254 = vld [vmem:[#allocation7 + $0xc0] sm:$0xff]
    %v255 = vld [vmem:[#allocation7 + $0xc8] sm:$0xff]
    %v256 = vld [vmem:[#allocation7 + $0xd0] sm:$0xff]
    %v257 = vld [vmem:[#allocation7 + $0xd8] sm:$0xff]
    %v258 = vld [vmem:[#allocation7 + $0xe0] sm:$0xff]
    %v259 = vld [vmem:[#allocation7 + $0xe8] sm:$0xff]
    %v260 = vld [vmem:[#allocation7 + $0xf0] sm:$0xff]
    %v261 = vld [vmem:[#allocation7 + $0xf8] sm:$0xff]
    %v262 = vld [vmem:[#allocation7 + $0x100] sm:$0xff]
    %v263 = vld [vmem:[#allocation7 + $0x108] sm:$0xff]
    %v264 = vld [vmem:[#allocation7 + $0x110] sm:$0xff]
    %v265 = vld [vmem:[#allocation7 + $0x118] sm:$0xff]
    %v266 = vld [vmem:[#allocation7 + $0x120] sm:$0xff]
    %v267 = vld [vmem:[#allocation7 + $0x128] sm:$0xff]
    %v268 = vld [vmem:[#allocation7 + $0x130] sm:$0xff]
    %v269 = vld [vmem:[#allocation7 + $0x138] sm:$0xff]
    %v270 = vld [vmem:[#allocation7 + $0x140] sm:$0xff]
    %v271 = vld [vmem:[#allocation7 + $0x148] sm:$0xff]
    %v272 = vld [vmem:[#allocation7 + $0x150] sm:$0xff]
    %v273 = vld [vmem:[#allocation7 + $0x158] sm:$0xff]
    %v274 = vld [vmem:[#allocation7 + $0x160] sm:$0xff]
    %v275 = vld [vmem:[#allocation7 + $0x168] sm:$0xff]
    %v276 = vld [vmem:[#allocation7 + $0x170] sm:$0xff]
    %v277 = vld [vmem:[#allocation7 + $0x178] sm:$0xff]
    %v278 = vld [vmem:[#allocation7 + $0x180] sm:$0xff]
    %v279 = vld [vmem:[#allocation7 + $0x188] sm:$0xff]
    %v280 = vld [vmem:[#allocation7 + $0x190] sm:$0xff]
    %v281 = vld [vmem:[#allocation7 + $0x198] sm:$0xff]
    %v282 = vld [vmem:[#allocation7 + $0x1a0] sm:$0xff]
    %v283 = vld [vmem:[#allocation7 + $0x1a8] sm:$0xff]
    %v284 = vld [vmem:[#allocation7 + $0x1b0] sm:$0xff]
    %v285 = vld [vmem:[#allocation7 + $0x1b8] sm:$0xff]
    %v286 = vld [vmem:[#allocation7 + $0x1c0] sm:$0xff]
    %v287 = vld [vmem:[#allocation7 + $0x1c8] sm:$0xff]
    %v288 = vld [vmem:[#allocation7 + $0x1d0] sm:$0xff]
    %v289 = vld [vmem:[#allocation7 + $0x1d8] sm:$0xff]
    %v290 = vld [vmem:[#allocation7 + $0x1e0] sm:$0xff]
    %v291 = vld [vmem:[#allocation7 + $0x1e8] sm:$0xff]
    %v292 = vld [vmem:[#allocation7 + $0x1f0] sm:$0xff]
    %v293 = vld [vmem:[#allocation7 + $0x1f8] sm:$0xff]
    %v294 = vld [vmem:[#allocation7 + $0x200] sm:$0xff]
    %v295 = vld [vmem:[#allocation7 + $0x208] sm:$0xff]
    %v296 = vld [vmem:[#allocation7 + $0x210] sm:$0xff]
    %v297 = vld [vmem:[#allocation7 + $0x218] sm:$0xff]
    %v298 = vld [vmem:[#allocation7 + $0x220] sm:$0xff]
    %v299 = vld [vmem:[#allocation7 + $0x228] sm:$0xff]
    %v300 = vld [vmem:[#allocation7 + $0x230] sm:$0xff]
    %v301 = vld [vmem:[#allocation7 + $0x238] sm:$0xff]
    %v302 = vld [vmem:[#allocation7 + $0x240] sm:$0xff]
    %v303 = vld [vmem:[#allocation7 + $0x248] sm:$0xff]
    %v304 = vld [vmem:[#allocation7 + $0x250] sm:$0xff]
    %v305 = vld [vmem:[#allocation7 + $0x258] sm:$0xff]
    %v306 = vld [vmem:[#allocation7 + $0x260] sm:$0xff]
    %v307 = vld [vmem:[#allocation7 + $0x268] sm:$0xff]
    %v308 = vld [vmem:[#allocation7 + $0x270] sm:$0xff]
    %v309 = vld [vmem:[#allocation7 + $0x278] sm:$0xff]
    %v310 = vld [vmem:[#allocation7 + $0x280] sm:$0xff]
    %v311 = vld [vmem:[#allocation7 + $0x288] sm:$0xff]
    %v312 = vld [vmem:[#allocation7 + $0x290] sm:$0xff]
    %v313 = vld [vmem:[#allocation7 + $0x298] sm:$0xff]
    %v314 = vld [vmem:[#allocation7 + $0x2a0] sm:$0xff]
    %v315 = vld [vmem:[#allocation7 + $0x2a8] sm:$0xff]
    %v316 = vld [vmem:[#allocation7 + $0x2b0] sm:$0xff]
    %v317 = vld [vmem:[#allocation7 + $0x2b8] sm:$0xff]
    %v318 = vld [vmem:[#allocation7 + $0x2c0] sm:$0xff]
    %v319 = vld [vmem:[#allocation7 + $0x2c8] sm:$0xff]
    %v320 = vld [vmem:[#allocation7 + $0x2d0] sm:$0xff]
    %v321 = vld [vmem:[#allocation7 + $0x2d8] sm:$0xff]
    %v322 = vld [vmem:[#allocation7 + $0x2e0] sm:$0xff]
    %v323 = vld [vmem:[#allocation7 + $0x2e8] sm:$0xff]
    %v324 = vld [vmem:[#allocation7 + $0x2f0] sm:$0xff]
    %v325 = vld [vmem:[#allocation7 + $0x2f8] sm:$0xff]
    %326 = vmatprep.subr.mxu0 0.0
    %327 = vmatpush1.msra.mxu0 %v230
    %328 = vmatprep.subr.mxu0 0.0
    %329 = vmatpush1.msra.mxu0 %v231
    %330 = vmatprep.subr.mxu0 0.0
    %331 = vmatpush1.msra.mxu0 %v232
    %332 = vmatprep.subr.mxu0 0.0
    %333 = vmatpush1.msra.mxu0 %v233
    %334 = vmatprep.subr.mxu0 0.0
    %335 = vmatpush1.msra.mxu0 %v234
    %336 = vmatprep.subr.mxu0 0.0
    %337 = vmatpush1.msra.mxu0 %v235
    %338 = vmatprep.subr.mxu0 0.0
    %339 = vmatpush1.msra.mxu0 %v236
    %340 = vmatprep.subr.mxu0 0.0
    %341 = vmatpush1.msra.mxu0 %v237
    %342 = vmatprep.subr.mxu0 0.0
    %343 = vmatpush1.msra.mxu0 %v238
    %344 = vmatprep.subr.mxu0 0.0
    %345 = vmatpush1.msra.mxu0 %v239
    %346 = vmatprep.subr.mxu0 0.0
    %347 = vmatpush1.msra.mxu0 %v240
    %348 = vmatprep.subr.mxu0 0.0
    %349 = vmatpush1.msra.mxu0 %v241
    %350 = vmatprep.subr.mxu0 0.0
    %351 = vmatpush1.msra.mxu0 %v242
    %352 = vmatprep.subr.mxu0 0.0
    %353 = vmatpush1.msra.mxu0 %v243
    %354 = vmatprep.subr.mxu0 0.0
    %355 = vmatpush1.msra.mxu0 %v244
    %356 = vmatprep.subr.mxu0 0.0
    %357 = vmatpush1.msra.mxu0 %v245
    %358 = vmatprep.subr.mxu0 0.0
    %359 = vmatpush1.msra.mxu0 %v246
    %360 = vmatprep.subr.mxu0 0.0
    %361 = vmatpush1.msra.mxu0 %v247
    %362 = vmatprep.subr.mxu0 0.0
    %363 = vmatpush1.msra.mxu0 %v248
    %364 = vmatprep.subr.mxu0 0.0
    %365 = vmatpush1.msra.mxu0 %v249
    %366 = vmatprep.subr.mxu0 0.0
    %367 = vmatpush1.msra.mxu0 %v250
    %368 = vmatprep.subr.mxu0 0.0
    %369 = vmatpush1.msra.mxu0 %v251
    %370 = vmatprep.subr.mxu0 0.0
    %371 = vmatpush1.msra.mxu0 %v252
    %372 = vmatprep.subr.mxu0 0.0
    %373 = vmatpush1.msra.mxu0 %v253
    %374 = vmatprep.subr.mxu0 0.0
    %375 = vmatpush1.msra.mxu0 %v254
    %376 = vmatprep.subr.mxu0 0.0
    %377 = vmatpush1.msra.mxu0 %v255
    %378 = vmatprep.subr.mxu0 0.0
    %379 = vmatpush1.msra.mxu0 %v256
    %380 = vmatprep.subr.mxu0 0.0
    %381 = vmatpush1.msra.mxu0 %v257
    %382 = vmatprep.subr.mxu0 0.0
    %383 = vmatpush1.msra.mxu0 %v258
    %384 = vmatprep.subr.mxu0 0.0
    %385 = vmatpush1.msra.mxu0 %v259
    %386 = vmatprep.subr.mxu0 0.0
    %387 = vmatpush1.msra.mxu0 %v260
    %388 = vmatprep.subr.mxu0 0.0
    %389 = vmatpush1.msra.mxu0 %v261
    %390 = vmatprep.mubr.f32.mxu0 %v219
    %391 = vmatmul.mubr.f32.gmra.mrb[0].mxu0 %v218
    %v392 = vpop.f32.mrb[0].mxu0
    %v393 = vadd.f32 0.0, %v392
    %v394 = vpop.f32.mrb[0].mxu0
    %395 = vmatprep.mubr.f32.mxu0 %v225
    %396 = vmatmul.mubr.f32.gmra.mrb[0].mxu0 %v224
    %v397 = vpop.f32.mrb[0].mxu0
    %v398 = vadd.f32 0.0, %v397
    %v399 = vpop.f32.mrb[0].mxu0
    %400 = vdwg.mxu0
    %401 = vmatprep.subr.mxu0 0.0
    %402 = vmatpush1.msra.mxu0 %v262
    %403 = vmatprep.subr.mxu0 0.0
    %404 = vmatpush1.msra.mxu0 %v263
    %405 = vmatprep.subr.mxu0 0.0
    %406 = vmatpush1.msra.mxu0 %v264
    %407 = vmatprep.subr.mxu0 0.0
    %408 = vmatpush1.msra.mxu0 %v265
    %409 = vmatprep.subr.mxu0 0.0
    %410 = vmatpush1.msra.mxu0 %v266
    %411 = vmatprep.subr.mxu0 0.0
    %412 = vmatpush1.msra.mxu0 %v267
    %413 = vmatprep.subr.mxu0 0.0
    %414 = vmatpush1.msra.mxu0 %v268
    %415 = vmatprep.subr.mxu0 0.0
    %416 = vmatpush1.msra.mxu0 %v269
    %417 = vmatprep.subr.mxu0 0.0
    %418 = vmatpush1.msra.mxu0 %v270
    %419 = vmatprep.subr.mxu0 0.0
    %420 = vmatpush1.msra.mxu0 %v271
    %421 = vmatprep.subr.mxu0 0.0
    %422 = vmatpush1.msra.mxu0 %v272
    %423 = vmatprep.subr.mxu0 0.0
    %424 = vmatpush1.msra.mxu0 %v273
    %425 = vmatprep.subr.mxu0 0.0
    %426 = vmatpush1.msra.mxu0 %v274
    %427 = vmatprep.subr.mxu0 0.0
    %428 = vmatpush1.msra.mxu0 %v275
    %429 = vmatprep.subr.mxu0 0.0
    %430 = vmatpush1.msra.mxu0 %v276
    %431 = vmatprep.subr.mxu0 0.0
    %432 = vmatpush1.msra.mxu0 %v277
    %433 = vmatprep.subr.mxu0 0.0
    %434 = vmatpush1.msra.mxu0 %v278
    %435 = vmatprep.subr.mxu0 0.0
    %436 = vmatpush1.msra.mxu0 %v279
    %437 = vmatprep.subr.mxu0 0.0
    %438 = vmatpush1.msra.mxu0 %v280
    %439 = vmatprep.subr.mxu0 0.0
    %440 = vmatpush1.msra.mxu0 %v281
    %441 = vmatprep.subr.mxu0 0.0
    %442 = vmatpush1.msra.mxu0 %v282
    %443 = vmatprep.subr.mxu0 0.0
    %444 = vmatpush1.msra.mxu0 %v283
    %445 = vmatprep.subr.mxu0 0.0
    %446 = vmatpush1.msra.mxu0 %v284
    %447 = vmatprep.subr.mxu0 0.0
    %448 = vmatpush1.msra.mxu0 %v285
    %449 = vmatprep.subr.mxu0 0.0
    %450 = vmatpush1.msra.mxu0 %v286
    %451 = vmatprep.subr.mxu0 0.0
    %452 = vmatpush1.msra.mxu0 %v287
    %453 = vmatprep.subr.mxu0 0.0
    %454 = vmatpush1.msra.mxu0 %v288
    %455 = vmatprep.subr.mxu0 0.0
    %456 = vmatpush1.msra.mxu0 %v289
    %457 = vmatprep.subr.mxu0 0.0
    %458 = vmatpush1.msra.mxu0 %v290
    %459 = vmatprep.subr.mxu0 0.0
    %460 = vmatpush1.msra.mxu0 %v291
    %461 = vmatprep.subr.mxu0 0.0
    %462 = vmatpush1.msra.mxu0 %v292
    %463 = vmatprep.subr.mxu0 0.0
    %464 = vmatpush1.msra.mxu0 %v293
    %465 = vmatprep.mubr.f32.mxu0 %v221
    %466 = vmatmul.mubr.f32.gmra.mrb[0].mxu0 %v220
    %v467 = vpop.f32.mrb[0].mxu0
    %v468 = vadd.f32 %v393, %v467
    %v469 = vpop.f32.mrb[0].mxu0
    %470 = vmatprep.mubr.f32.mxu0 %v227
    %471 = vmatmul.mubr.f32.gmra.mrb[0].mxu0 %v226
    %v472 = vpop.f32.mrb[0].mxu0
    %v473 = vadd.f32 %v398, %v472
    %v474 = vpop.f32.mrb[0].mxu0
    %475 = vdwg.mxu0
    %476 = vmatprep.subr.mxu0 0.0
    %477 = vmatpush1.msra.mxu0 %v294
    %478 = vmatprep.subr.mxu0 0.0
    %479 = vmatpush1.msra.mxu0 %v295
    %480 = vmatprep.subr.mxu0 0.0
    %481 = vmatpush1.msra.mxu0 %v296
    %482 = vmatprep.subr.mxu0 0.0
    %483 = vmatpush1.msra.mxu0 %v297
    %484 = vmatprep.subr.mxu0 0.0
    %485 = vmatpush1.msra.mxu0 %v298
    %486 = vmatprep.subr.mxu0 0.0
    %487 = vmatpush1.msra.mxu0 %v299
    %488 = vmatprep.subr.mxu0 0.0
    %489 = vmatpush1.msra.mxu0 %v300
    %490 = vmatprep.subr.mxu0 0.0
    %491 = vmatpush1.msra.mxu0 %v301
    %492 = vmatprep.subr.mxu0 0.0
    %493 = vmatpush1.msra.mxu0 %v302
    %494 = vmatprep.subr.mxu0 0.0
    %495 = vmatpush1.msra.mxu0 %v303
    %496 = vmatprep.subr.mxu0 0.0
    %497 = vmatpush1.msra.mxu0 %v304
    %498 = vmatprep.subr.mxu0 0.0
    %499 = vmatpush1.msra.mxu0 %v305
    %500 = vmatprep.subr.mxu0 0.0
    %501 = vmatpush1.msra.mxu0 %v306
    %502 = vmatprep.subr.mxu0 0.0
    %503 = vmatpush1.msra.mxu0 %v307
    %504 = vmatprep.subr.mxu0 0.0
    %505 = vmatpush1.msra.mxu0 %v308
    %506 = vmatprep.subr.mxu0 0.0
    %507 = vmatpush1.msra.mxu0 %v309
    %508 = vmatprep.subr.mxu0 0.0
    %509 = vmatpush1.msra.mxu0 %v310
    %510 = vmatprep.subr.mxu0 0.0
    %511 = vmatpush1.msra.mxu0 %v311
    %512 = vmatprep.subr.mxu0 0.0
    %513 = vmatpush1.msra.mxu0 %v312
    %514 = vmatprep.subr.mxu0 0.0
    %515 = vmatpush1.msra.mxu0 %v313
    %516 = vmatprep.subr.mxu0 0.0
    %517 = vmatpush1.msra.mxu0 %v314
    %518 = vmatprep.subr.mxu0 0.0
    %519 = vmatpush1.msra.mxu0 %v315
    %520 = vmatprep.subr.mxu0 0.0
    %521 = vmatpush1.msra.mxu0 %v316
    %522 = vmatprep.subr.mxu0 0.0
    %523 = vmatpush1.msra.mxu0 %v317
    %524 = vmatprep.subr.mxu0 0.0
    %525 = vmatpush1.msra.mxu0 %v318
    %526 = vmatprep.subr.mxu0 0.0
    %527 = vmatpush1.msra.mxu0 %v319
    %528 = vmatprep.subr.mxu0 0.0
    %529 = vmatpush1.msra.mxu0 %v320
    %530 = vmatprep.subr.mxu0 0.0
    %531 = vmatpush1.msra.mxu0 %v321
    %532 = vmatprep.subr.mxu0 0.0
    %533 = vmatpush1.msra.mxu0 %v322
    %534 = vmatprep.subr.mxu0 0.0
    %535 = vmatpush1.msra.mxu0 %v323
    %536 = vmatprep.subr.mxu0 0.0
    %537 = vmatpush1.msra.mxu0 %v324
    %538 = vmatprep.subr.mxu0 0.0
    %539 = vmatpush1.msra.mxu0 %v325
    %540 = vmatprep.mubr.f32.mxu0 %v223
    %541 = vmatmul.mubr.f32.gmra.mrb[0].mxu0 %v222
    %v542 = vpop.f32.mrb[0].mxu0
    %v543 = vadd.f32 %v468, %v542
    %v544 = vpop.f32.mrb[0].mxu0
    %545 = vmatprep.mubr.f32.mxu0 %v229
    %546 = vmatmul.mubr.f32.gmra.mrb[0].mxu0 %v228
    %v547 = vpop.f32.mrb[0].mxu0
    %v548 = vadd.f32 %v473, %v547
    %v549 = vpop.f32.mrb[0].mxu0
    %550 = vdwg.mxu0
    %551 = vst [vmem:[#allocation8] sm:$0xff] %v543
    %552 = vst [vmem:[#allocation8 + $0x8] sm:$0xff] %v548
    // Predicated region
    $region30: #{tpu_custom_call.1} parent=1 // pred_check
      _
    $region31: #{tpu_custom_call.1} parent=1 // pred_check_branch
      %554 = sbr.rel (0) target = $region33
    $region32: #{tpu_custom_call.1} parent=1 // pred_region
      %s556 = ssub.s32 256, 256
      %557 = vsyncadd [#allocation4], %s556
      %s558 = sshll.u32 [#allocation8], 4
      %s559 = int_to_ptr.vmem [resolvable:$true] %s558
      %564 = dma.vmem_to_hbm [thread:$0]  %s559, 256, %s4, [#allocation4], 128, 128, 8
    $region33: #{tpu_custom_call.1} parent=1 // pred_fallthru
      _
    // Predicated region
    $region34: #{tpu_custom_call.1} parent=1 // pred_check
      _
    $region35: #{tpu_custom_call.1} parent=1 // pred_check_branch
      %566 = sbr.rel (0) target = $region37
    $region36: #{tpu_custom_call.1} parent=1 // pred_region
      %567 = dma.done [#allocation4], 256
    $region37: #{tpu_custom_call.1} parent=1 // pred_fallthru
      _
    %568 = vsyncpa [#allocation3], 1
    %569 = vsyncpa [#allocation6], 1
    %570 = vsyncpa [#allocation4], 1

</llo_original>
